<compile_context>
chip_gen: v6e
topology: v6e:2x2x1
jax: 0.10.0
libtpu: 0.0.40
codegen_flags: <defaults>
</compile_context>

<pallas_src>
import jax
import jax.numpy as jnp
from jax.experimental import pallas as pl
from jax.experimental.pallas import tpu as pltpu


_NEG_SLOPE = 0.01      # LeakyReLU negative slope
_MAX_TILE_B = 8192     # batch rows per grid step (balances DMA vs ~0.35us step cost)
_MIN_TILE_B = 16       # sublane-friendly minimum (f32 rows: 8; bf16 hidden packing: 16)


def _round_up(n: int, m: int) -> int:
    return ((n + m - 1) // m) * m


def _cdiv(a: int, b: int) -> int:
    return -(-a // b)


def _choose_tiling(batch: int):
    """Balanced batch tiling.

    Caps tail padding at one sub-tile (instead of up to ~2x waste with a fixed
    tile) and keeps the grid at >= 2 steps whenever the batch is big enough to
    split, so dimension_semantics=("parallel",) can shard tiles across v7x's
    two TensorCores (no-op on single-core v5e/v6e).
    """
    n_tiles = max(1, _cdiv(batch, _MAX_TILE_B))
    if n_tiles == 1 and batch >= 2 * _MIN_TILE_B:
        n_tiles = 2
    tile_b = _round_up(_cdiv(batch, n_tiles), _MIN_TILE_B)
    return tile_b, n_tiles


def _vmem_limit_bytes(tile_b: int, in_size: int, hidden: int, out_size: int) -> int:
    """Generous scoped-VMEM budget: double-buffered streaming tiles + resident
    weights + 2x the in-kernel hidden activations (f32 + bf16 copies), plus
    headroom.  Clamped to [16 MiB, 48 MiB] — never below the smallest default
    (v5e), well under v7x's 64 MiB physical VMEM."""
    stream = 2 * tile_b * (in_size * 4 + out_size * 4)          # x + out, double-buffered
    weights = 2 * (in_size * hidden * 2 + hidden * 4
                   + hidden * out_size * 2 + out_size * 4)
    hidden_act = tile_b * hidden * (4 + 2)                      # f32 h + bf16 copy
    need = stream + weights + 2 * hidden_act + (4 << 20)
    return int(min(max(need, 16 << 20), 48 << 20))


def dqn_snake_kernel(x_ref, w1_ref, b1_ref, w2_ref, b2_ref, o_ref):
    """One batch tile of the fused MLP.

    x_ref : (tile_b, in_size)   f32   raw input features (cast to bf16 here)
    w1_ref: (in_size, hidden)   bf16  VMEM-resident
    b1_ref: (1, hidden)         f32
    w2_ref: (hidden, out_size)  bf16  VMEM-resident
    b2_ref: (1, out_size)       f32
    o_ref : (tile_b, out_size)  f32   narrow output tile (only real columns hit HBM)
    """
    x = x_ref[...].astype(jnp.bfloat16)                               # in-kernel cast (VPU)
    # Layer 1: bf16 MXU matmul, f32 accumulation (K = in_size, masked by Mosaic).
    h = jnp.dot(x, w1_ref[...], preferred_element_type=jnp.float32)
    h = h + b1_ref[...]                                               # f32 bias add
    h = jnp.maximum(h, _NEG_SLOPE * h)                                # LeakyReLU (single vmax)
    # Layer 2: cast activations to bf16 for the MXU, accumulate in f32.
    q = jnp.dot(h.astype(jnp.bfloat16), w2_ref[...],
                preferred_element_type=jnp.float32)
    o_ref[...] = (q + b2_ref[...]).astype(o_ref.dtype)


def prepare_params(w1, b1, w2, b2):
    """One-time dtype/layout prep — keep OUT of the per-step forward path."""
    return (w1.astype(jnp.bfloat16),
            b1.reshape(1, -1).astype(jnp.float32),
            w2.astype(jnp.bfloat16),
            b2.reshape(1, -1).astype(jnp.float32))


@jax.jit
def dqn_snake_forward(x, w1_bf16, b1_row, w2_bf16, b2_row):
    """x: (B, input_size) f32; prepared params from prepare_params().

    Returns (B, output_size) f32 Q-values.
    """
    B, in_size = x.shape
    hidden = w1_bf16.shape[1]
    out_size = w2_bf16.shape[1]

    tile_b, n_tiles = _choose_tiling(B)
    B_pad = tile_b * n_tiles

    # Only batch-row padding (ragged B); feature dim stays at its true width.
    x_pad = x if B_pad == B else jnp.pad(x, ((0, B_pad - B), (0, 0)))

    out_padded = pl.pallas_call(
        dqn_snake_kernel,
        out_shape=jax.ShapeDtypeStruct((B_pad, out_size), jnp.float32),
        grid=(n_tiles,),
        in_specs=[
            pl.BlockSpec((tile_b, in_size), lambda i: (i, 0)),    # x: streamed per tile
            pl.BlockSpec((in_size, hidden), lambda i: (0, 0)),    # w1: VMEM-resident
            pl.BlockSpec((1, hidden),       lambda i: (0, 0)),    # b1: VMEM-resident
            pl.BlockSpec((hidden, out_size), lambda i: (0, 0)),   # w2: VMEM-resident
            pl.BlockSpec((1, out_size),     lambda i: (0, 0)),    # b2: VMEM-resident
        ],
        out_specs=pl.BlockSpec((tile_b, out_size), lambda i: (i, 0)),
        compiler_params=pltpu.CompilerParams(
            dimension_semantics=("parallel",),   # shard batch tiles across v7x's 2 TCs
            vmem_limit_bytes=_vmem_limit_bytes(tile_b, in_size, hidden, out_size)),
    )(x_pad, w1_bf16, b1_row, w2_bf16, b2_row)

    # Padded rows are nonzero garbage-from-zeros (LeakyReLU(b1) @ w2 + b2): slice them off.
    return out_padded[:B]


def init_params(key, input_size, hidden_size, output_size):
    """Deterministic init mimicking nn.Linear default (uniform +/- 1/sqrt(fan_in))."""
    k1, k2, k3, k4 = jax.random.split(key, 4)
    bound1 = 1.0 / jnp.sqrt(jnp.float32(input_size))
    bound2 = 1.0 / jnp.sqrt(jnp.float32(hidden_size))
    w1 = jax.random.uniform(k1, (input_size, hidden_size), jnp.float32, -bound1, bound1)
    b1 = jax.random.uniform(k2, (hidden_size,), jnp.float32, -bound1, bound1)
    w2 = jax.random.uniform(k3, (hidden_size, output_size), jnp.float32, -bound2, bound2)
    b2 = jax.random.uniform(k4, (output_size,), jnp.float32, -bound2, bound2)
    return w1, b1, w2, b2


def _reference(x, w1, b1, w2, b2):
    h = x @ w1 + b1
    h = jnp.where(h >= 0, h, _NEG_SLOPE * h)
    return h @ w2 + b2


if __name__ == "__main__":
    # Typical Snake DQN: 11-dim state, 3 actions.
    batch, input_size, hidden_size, output_size = 2, 11, 128, 3

    key = jax.random.PRNGKey(0)
    kx, kp = jax.random.split(key)
    x = jax.random.normal(kx, (batch, input_size), jnp.float32)
    w1, b1, w2, b2 = init_params(kp, input_size, hidden_size, output_size)
    params = prepare_params(w1, b1, w2, b2)   # one-time cast/reshape, off the hot path

    # Tiny batch (B=2): single minimum-size (16-row) tile.
    q_vals = dqn_snake_forward(x, *params)
    jax.block_until_ready(q_vals)
    assert q_vals.shape == (batch, output_size)
    q_ref = _reference(x, w1, b1, w2, b2)
    # bf16 MXU inputs -> loosened tolerance vs. the f32 reference.
    # TODO(synk): if exact f32 parity with the PyTorch module is required, keep
    # the matmuls in f32 (drop the bf16 casts) at ~4x MXU cost.
    assert jnp.allclose(q_vals, q_ref, atol=5e-2, rtol=5e-2)

    # Ragged batch (B=37): exercises balanced 2-tile grid + batch-row padding.
    x_big = jax.random.normal(jax.random.PRNGKey(1), (37, input_size), jnp.float32)
    q_big = dqn_snake_forward(x_big, *params)
    jax.block_until_ready(q_big)
    assert q_big.shape == (37, output_size)
    q_big_ref = _reference(x_big, w1, b1, w2, b2)
    assert jnp.allclose(q_big, q_big_ref, atol=5e-2, rtol=5e-2)

    print("KERNEL_OK")
</pallas_src>

<mosaic_0001>
module attributes {stable_mosaic.version = 11 : i64} {
  func.func @dqn_snake_kernel(%arg0: i32, %arg1: memref<16x11xf32, #tpu.memory_space<vmem>>, %arg2: memref<11x128xbf16, #tpu.memory_space<vmem>>, %arg3: memref<1x128xf32, #tpu.memory_space<vmem>>, %arg4: memref<128x3xbf16, #tpu.memory_space<vmem>>, %arg5: memref<1x3xf32, #tpu.memory_space<vmem>>, %arg6: memref<16x3xf32, #tpu.memory_space<vmem>>) attributes {dimension_semantics = [#tpu.dimension_semantics<parallel>], iteration_bounds = array<i64: 1>, scalar_prefetch = 0 : i64, scratch_operands = 0 : i64, tpu.core_type = #tpu.core_type<tc>, window_params = [{transform_indices = @transform_0, window_bounds = array<i64: 16, 11>}, {pipeline_mode = #tpu.pipeline_mode<synchronous>, transform_indices = @transform_1, window_bounds = array<i64: 11, 128>}, {pipeline_mode = #tpu.pipeline_mode<synchronous>, transform_indices = @transform_2, window_bounds = array<i64: 1, 128>}, {pipeline_mode = #tpu.pipeline_mode<synchronous>, transform_indices = @transform_3, window_bounds = array<i64: 128, 3>}, {pipeline_mode = #tpu.pipeline_mode<synchronous>, transform_indices = @transform_4, window_bounds = array<i64: 1, 3>}, {transform_indices = @transform_5, window_bounds = array<i64: 16, 3>}]} {
    %c0 = arith.constant 0 : index
    %c0_0 = arith.constant 0 : index
    %0 = vector.load %arg1[%c0, %c0_0] : memref<16x11xf32, #tpu.memory_space<vmem>>, vector<16x11xf32>
    %1 = arith.truncf %0 : vector<16x11xf32> to vector<16x11xbf16>
    %c0_1 = arith.constant 0 : index
    %c0_2 = arith.constant 0 : index
    %2 = vector.load %arg2[%c0_1, %c0_2] : memref<11x128xbf16, #tpu.memory_space<vmem>>, vector<11x128xbf16>
    %cst = arith.constant dense<0.000000e+00> : vector<16x128xf32>
    %3 = tpu.matmul %1, %2, %cst {dimension_numbers = #tpu.dot_dimension_numbers<[1], [0], [0], [1], [0, 0, 1, 1], [], []>} : vector<16x11xbf16>, vector<11x128xbf16>, vector<16x128xf32> -> vector<16x128xf32>
    %c0_3 = arith.constant 0 : index
    %c0_4 = arith.constant 0 : index
    %4 = vector.load %arg3[%c0_3, %c0_4] : memref<1x128xf32, #tpu.memory_space<vmem>>, vector<1x128xf32>
    %5 = vector.broadcast %4 : vector<1x128xf32> to vector<16x128xf32>
    %6 = arith.addf %3, %5 : vector<16x128xf32>
    %cst_5 = arith.constant 0.00999999977 : f32
    %7 = vector.broadcast %cst_5 : f32 to vector<16x128xf32>
    %8 = arith.mulf %7, %6 : vector<16x128xf32>
    %9 = arith.maximumf %6, %8 : vector<16x128xf32>
    %10 = arith.truncf %9 : vector<16x128xf32> to vector<16x128xbf16>
    %c0_6 = arith.constant 0 : index
    %c0_7 = arith.constant 0 : index
    %11 = vector.load %arg4[%c0_6, %c0_7] : memref<128x3xbf16, #tpu.memory_space<vmem>>, vector<128x3xbf16>
    %cst_8 = arith.constant dense<0.000000e+00> : vector<16x3xf32>
    %12 = tpu.matmul %10, %11, %cst_8 {dimension_numbers = #tpu.dot_dimension_numbers<[1], [0], [0], [1], [0, 0, 1, 1], [], []>} : vector<16x128xbf16>, vector<128x3xbf16>, vector<16x3xf32> -> vector<16x3xf32>
    %c0_9 = arith.constant 0 : index
    %c0_10 = arith.constant 0 : index
    %13 = vector.load %arg5[%c0_9, %c0_10] : memref<1x3xf32, #tpu.memory_space<vmem>>, vector<1x3xf32>
    %14 = vector.broadcast %13 : vector<1x3xf32> to vector<16x3xf32>
    %15 = arith.addf %12, %14 : vector<16x3xf32>
    %c0_11 = arith.constant 0 : index
    %c0_12 = arith.constant 0 : index
    %16 = vector.load %arg6[%c0_11, %c0_12] : memref<16x3xf32, #tpu.memory_space<vmem>>, vector<16x3xf32>
    tpu.vector_store %arg6[%c0_11, %c0_12], %15 {strides = array<i32>} : memref<16x3xf32, #tpu.memory_space<vmem>>, vector<16x3xf32>,
    return
  }
  func.func @transform_0(%arg0: i32) -> (i32, i32) {
    %c0_i32 = arith.constant 0 : i32
    %c0_i32_0 = arith.constant 0 : i32
    return %arg0, %c0_i32 : i32, i32
  }
  func.func @transform_1(%arg0: i32) -> (i32, i32) {
    %c0_i32 = arith.constant 0 : i32
    %c0_i32_0 = arith.constant 0 : i32
    %c0_i32_1 = arith.constant 0 : i32
    return %c0_i32, %c0_i32_0 : i32, i32
  }
  func.func @transform_2(%arg0: i32) -> (i32, i32) {
    %c0_i32 = arith.constant 0 : i32
    %c0_i32_0 = arith.constant 0 : i32
    %c0_i32_1 = arith.constant 0 : i32
    return %c0_i32, %c0_i32_0 : i32, i32
  }
  func.func @transform_3(%arg0: i32) -> (i32, i32) {
    %c0_i32 = arith.constant 0 : i32
    %c0_i32_0 = arith.constant 0 : i32
    %c0_i32_1 = arith.constant 0 : i32
    return %c0_i32, %c0_i32_0 : i32, i32
  }
  func.func @transform_4(%arg0: i32) -> (i32, i32) {
    %c0_i32 = arith.constant 0 : i32
    %c0_i32_0 = arith.constant 0 : i32
    %c0_i32_1 = arith.constant 0 : i32
    return %c0_i32, %c0_i32_0 : i32, i32
  }
  func.func @transform_5(%arg0: i32) -> (i32, i32) {
    %c0_i32 = arith.constant 0 : i32
    %c0_i32_0 = arith.constant 0 : i32
    return %arg0, %c0_i32 : i32, i32
  }
}

</mosaic_0001>

<llo_original>
// kernel: dqn_snake_forward.1
$region0: #{dqn_snake_forward.1}
  #allocation0 [shape = 'u32[]', space=smem, size = 0x4, offset = 0x4, fixed_abs, tag = 'smem constant byte address 0x4 - core index']
  #allocation1 [shape = 'u32[144,128]{1,0:T(1,128)}', space=vmem, size = 0x12000, scoped, tag = 'internal scratch']
  %s0 = inlined_call_operand.vmem [shape: f32[16,11], index: 0, kind: input, shape index: {}]
  %s1 = inlined_call_operand.vmem [shape: bf16[11,128], index: 1, kind: input, shape index: {}]
  %s2 = inlined_call_operand.vmem [shape: f32[1,128], index: 2, kind: input, shape index: {}]
  %s3 = inlined_call_operand.vmem [shape: bf16[128,3], index: 3, kind: input, shape index: {}]
  %s4 = inlined_call_operand.vmem [shape: f32[1,3], index: 4, kind: input, shape index: {}]
  %s5 = inlined_call_operand.vmem [shape: f32[16,3], index: 5, kind: output, shape index: {}]
  %s6 = sld [smem:[#allocation0]]
  $region30: #{dqn_snake_forward.1} parent=0
    _
  %s8 = ssub.s32 1, %s6
  %s9 = scalar_select 0, %s8, %s6
  // Predicated region
  $region2: #{dqn_snake_forward.1} parent=0 // pred_check
    _
  $region3: #{dqn_snake_forward.1} parent=0 // pred_check_branch
    %11 = sbr.rel (0) target = $region5
  $region4: #{dqn_snake_forward.1} parent=0 // pred_region
    _
  $region5: #{dqn_snake_forward.1} parent=0 // pred_fallthru
    _
  // Predicated region
  $region6: #{dqn_snake_forward.1} parent=0 // pred_check
    _
  $region7: #{dqn_snake_forward.1} parent=0 // pred_check_branch
    %13 = sbr.rel (0) target = $region9
  $region8: #{dqn_snake_forward.1} parent=0 // pred_region
    _
  $region9: #{dqn_snake_forward.1} parent=0 // pred_fallthru
    _
  // Predicated region
  $region10: #{dqn_snake_forward.1} parent=0 // pred_check
    _
  $region11: #{dqn_snake_forward.1} parent=0 // pred_check_branch
    %15 = sbr.rel (0) target = $region13
  $region12: #{dqn_snake_forward.1} parent=0 // pred_region
    _
  $region13: #{dqn_snake_forward.1} parent=0 // pred_fallthru
    _
  // Predicated region
  $region14: #{dqn_snake_forward.1} parent=0 // pred_check
    _
  $region15: #{dqn_snake_forward.1} parent=0 // pred_check_branch
    %17 = sbr.rel (0) target = $region17
  $region16: #{dqn_snake_forward.1} parent=0 // pred_region
    _
  $region17: #{dqn_snake_forward.1} parent=0 // pred_fallthru
    _
  // Predicated region
  $region18: #{dqn_snake_forward.1} parent=0 // pred_check
    _
  $region19: #{dqn_snake_forward.1} parent=0 // pred_check_branch
    %19 = sbr.rel (0) target = $region21
  $region20: #{dqn_snake_forward.1} parent=0 // pred_region
    _
  $region21: #{dqn_snake_forward.1} parent=0 // pred_fallthru
    _
  %v21 = vld [vmem:[%s0] sm:$0xff]
  %v22 = vld [vmem:[%s0 + $0x8] sm:$0xff]
  %v23 = vpack.c.bf16 %v22, %v21
  %v24 = vld [vmem:[%s1] sm:$0xf]
  %v25 = vld [vmem:[%s1 + $0x4] sm:$0x3]
  %v26 = vld [vmem:[%s2] sm:$0x1]
  %v28 = vlaneseq
  %v29 = vshrl.u32 %v28, 7
  %v30 = vsub.s32 0, %v29
  %v31 = vrot.slane %v26, %v30
  %v35 = vunpack.c.l.b16 %v24
  %v36 = vunpack.c.l.b16 %v25
  %v37 = vpack.c.b16 %v36, %v35
  %vm38 = vcmask 89088
  %v40 = vsel %vm38, %v23, 0
  %vm42 = vcmask 1044480
  %vm43 = vcmask 1045504
  %v44 = vsel %vm42, 4294967295, 65535
  %v45 = vsel %vm43, %v44, 0
  %v47 = vand.u32 %v37, %v45
  %49 = vmatprep.subr.bf16.mxu0 0
  %50 = vmatpush1.bf16.msra.mxu0 0
  %51 = vmatprep.subr.bf16.mxu0 0
  %52 = vmatpush1.bf16.msra.mxu0 0
  %53 = vmatprep.subr.bf16.mxu0 0
  %54 = vmatpush1.bf16.msra.mxu0 0
  %55 = vmatprep.subr.bf16.mxu0 0
  %56 = vmatpush1.bf16.msra.mxu0 0
  %57 = vmatprep.subr.bf16.mxu0 0
  %58 = vmatpush1.bf16.msra.mxu0 0
  %59 = vmatprep.subr.bf16.mxu0 0
  %60 = vmatpush1.bf16.msra.mxu0 0
  %61 = vmatprep.subr.bf16.mxu0 0
  %62 = vmatpush1.bf16.msra.mxu0 0
  %63 = vmatprep.subr.bf16.mxu0 0
  %64 = vmatpush1.bf16.msra.mxu0 %v47
  %65 = vmatprep.subr.bf16.mxu0 0
  %66 = vmatpush2.bf16.msra.mxu0 0
  %67 = vmatprep.subr.bf16.mxu0 0
  %68 = vmatpush2.bf16.msra.mxu0 0
  %69 = vmatprep.subr.bf16.mxu0 0
  %70 = vmatpush2.bf16.msra.mxu0 0
  %71 = vmatprep.subr.bf16.mxu0 0
  %72 = vmatpush2.bf16.msra.mxu0 0
  %73 = vmatprep.subr.bf16.mxu0 0
  %74 = vmatpush2.bf16.msra.mxu0 0
  %75 = vmatprep.subr.bf16.mxu0 0
  %76 = vmatpush2.bf16.msra.mxu0 0
  %77 = vmatprep.subr.bf16.mxu0 0
  %78 = vmatpush2.bf16.msra.mxu0 0
  %79 = vmatprep.subr.bf16.mxu0 0
  %80 = vmatpush2.bf16.msra.mxu0 0
  %81 = vmatprep.mubr.bf16.mxu0 0
  %82 = vmatmul.mubr.bf16.gmra.mxu0 %v40
  %v83 = vpop.f32.mrf.mxu0
  %v84 = vadd.f32 %v31, %v83
  %v85 = vpop.f32.mrf.mxu0
  %v86 = vpop.f32.mrf.mxu0
  %v87 = vadd.f32 %v31, %v86
  %v88 = vpop.f32.mrf.mxu0
  %89 = vdwg.mxu0
  %v90 = vmul.f32 %v84, 0.01
  %v91 = vmul.f32 %v87, 0.01
  %v92 = vmax.f32 %v84, %v90
  %v93 = vmax.f32 %v87, %v91
  %v94 = vpack.c.bf16 %v93, %v92
  %v95 = vld [vmem:[%s3] sm:$0xf]
  %v96 = vld [vmem:[%s3 + $0x4] sm:$0xf]
  %v97 = vld [vmem:[%s3 + $0x8] sm:$0xf]
  %v98 = vld [vmem:[%s3 + $0xc] sm:$0xf]
  %v99 = vld [vmem:[%s3 + $0x10] sm:$0xf]
  %v100 = vld [vmem:[%s3 + $0x14] sm:$0xf]
  %v101 = vld [vmem:[%s3 + $0x18] sm:$0xf]
  %v102 = vld [vmem:[%s3 + $0x1c] sm:$0xf]
  %v103 = vld [vmem:[%s3 + $0x20] sm:$0xf]
  %v104 = vld [vmem:[%s3 + $0x24] sm:$0xf]
  %v105 = vld [vmem:[%s3 + $0x28] sm:$0xf]
  %v106 = vld [vmem:[%s3 + $0x2c] sm:$0xf]
  %v107 = vld [vmem:[%s3 + $0x30] sm:$0xf]
  %v108 = vld [vmem:[%s3 + $0x34] sm:$0xf]
  %v109 = vld [vmem:[%s3 + $0x38] sm:$0xf]
  %v110 = vld [vmem:[%s3 + $0x3c] sm:$0xf]
  %v111 = vld [vmem:[%s4] sm:$0x1]
  %v113 = vlaneseq
  %v114 = vshrl.u32 %v113, 7
  %v115 = vsub.s32 0, %v114
  %v116 = vrot.slane %v111, %v115
  %v134 = vunpack.c.l.b16 %v95
  %v135 = vunpack.c.l.b16 %v96
  %v136 = vunpack.c.l.b16 %v97
  %v137 = vunpack.c.l.b16 %v98
  %v138 = vunpack.c.l.b16 %v99
  %v139 = vunpack.c.l.b16 %v100
  %v140 = vunpack.c.l.b16 %v101
  %v141 = vunpack.c.l.b16 %v102
  %v142 = vunpack.c.l.b16 %v103
  %v143 = vunpack.c.l.b16 %v104
  %v144 = vunpack.c.l.b16 %v105
  %v145 = vunpack.c.l.b16 %v106
  %v146 = vunpack.c.l.b16 %v107
  %v147 = vunpack.c.l.b16 %v108
  %v148 = vunpack.c.l.b16 %v109
  %v149 = vunpack.c.l.b16 %v110
  %v150 = vpack.c.b16 %v135, %v134
  %v151 = vpack.c.b16 %v137, %v136
  %v152 = vpack.c.b16 %v139, %v138
  %v153 = vpack.c.b16 %v141, %v140
  %v154 = vpack.c.b16 %v143, %v142
  %v155 = vpack.c.b16 %v145, %v144
  %v156 = vpack.c.b16 %v147, %v146
  %v157 = vpack.c.b16 %v149, %v148
  %166 = vmatprep.subr.bf16.mxu0 0
  %167 = vmatpush1.bf16.msra.mxu0 %v157
  %168 = vmatprep.subr.bf16.mxu0 0
  %169 = vmatpush1.bf16.msra.mxu0 %v156
  %170 = vmatprep.subr.bf16.mxu0 0
  %171 = vmatpush1.bf16.msra.mxu0 %v155
  %172 = vmatprep.subr.bf16.mxu0 0
  %173 = vmatpush1.bf16.msra.mxu0 %v154
  %174 = vmatprep.subr.bf16.mxu0 0
  %175 = vmatpush1.bf16.msra.mxu0 %v153
  %176 = vmatprep.subr.bf16.mxu0 0
  %177 = vmatpush1.bf16.msra.mxu0 %v152
  %178 = vmatprep.subr.bf16.mxu0 0
  %179 = vmatpush1.bf16.msra.mxu0 %v151
  %180 = vmatprep.subr.bf16.mxu0 0
  %181 = vmatpush1.bf16.msra.mxu0 %v150
  %182 = vmatprep.subr.bf16.mxu0 0
  %183 = vmatpush2.bf16.msra.mxu0 0
  %184 = vmatprep.subr.bf16.mxu0 0
  %185 = vmatpush2.bf16.msra.mxu0 0
  %186 = vmatprep.subr.bf16.mxu0 0
  %187 = vmatpush2.bf16.msra.mxu0 0
  %188 = vmatprep.subr.bf16.mxu0 0
  %189 = vmatpush2.bf16.msra.mxu0 0
  %190 = vmatprep.subr.bf16.mxu0 0
  %191 = vmatpush2.bf16.msra.mxu0 0
  %192 = vmatprep.subr.bf16.mxu0 0
  %193 = vmatpush2.bf16.msra.mxu0 0
  %194 = vmatprep.subr.bf16.mxu0 0
  %195 = vmatpush2.bf16.msra.mxu0 0
  %196 = vmatprep.subr.bf16.mxu0 0
  %197 = vmatpush2.bf16.msra.mxu0 0
  %198 = vmatprep.mubr.bf16.mxu0 0
  %199 = vmatmul.mubr.bf16.gmra.mxu0 %v94
  %v200 = vpop.f32.mrf.mxu0
  %v201 = vadd.f32 %v116, %v200
  %v202 = vpop.f32.mrf.mxu0
  %v203 = vpop.f32.mrf.mxu0
  %v204 = vadd.f32 %v116, %v203
  %v205 = vpop.f32.mrf.mxu0
  %206 = vdwg.mxu0
  %vm207 = vcmask 23552
  %208 = vst.msk [vmem:[%s5] sm:$0xff] %vm207, %v201
  %209 = vst.msk [vmem:[%s5 + $0x8] sm:$0xff] %vm207, %v204
  // Predicated region
  $region22: #{dqn_snake_forward.1} parent=0 // pred_check
    _
  $region23: #{dqn_snake_forward.1} parent=0 // pred_check_branch
    %211 = sbr.rel (0) target = $region25
  $region24: #{dqn_snake_forward.1} parent=0 // pred_region
    _
  $region25: #{dqn_snake_forward.1} parent=0 // pred_fallthru
    _
  // Predicated region
  $region26: #{dqn_snake_forward.1} parent=0 // pred_check
    _
  $region27: #{dqn_snake_forward.1} parent=0 // pred_check_branch
    %213 = sbr.rel (0) target = $region29
  $region28: #{dqn_snake_forward.1} parent=0 // pred_region
    _
  $region29: #{dqn_snake_forward.1} parent=0 // pred_fallthru
    _

</llo_original>
